<compile_context>
chip_gen: v7x
topology: tpu7x:2x2x1
jax: 0.10.0
libtpu: 0.0.40
codegen_flags: <defaults>
</compile_context>

<pallas_src>
from functools import partial

import jax
import jax.numpy as jnp
from jax.experimental import pallas as pl
from jax.experimental.pallas import tpu as pltpu

Z_PAD = 128   # latent contraction dim padded 100 -> 128 (pad lanes carry 1.0)
LANE = 128    # lane-dense hidden / output width


def _generator_kernel(z_ref, params_ref, out_ref):
    """Fused Generator forward for one batch tile.

    z_ref      : (TB, 128)  latent; cols [100,128) are 1.0 (bias carriers)
    params_ref : (256, 128) packed parameters:
                   rows [0,100)   lanes [0,32) : W1
                   row  100       lanes [0,32) : b1,  lane 32 : 1.0
                   rows [128,160) lanes [0,C*2): fused client weights
                   row  160       lanes [0,C*2): fused client biases
    out_ref    : (TB, 128)  tanh output slab; cols [0, C*2) are valid
    """
    w1 = params_ref[:128, :]    # (128, 128), 8/128-aligned static slice
    wc = params_ref[128:, :]    # (128, 128)

    # Layer 1: Linear(100, 32) with bias folded into the matmul via the
    # ones-padded z columns.  Hidden lane 32 evaluates to exactly 1.0 and
    # carries the layer-2 bias through the next matmul.
    pre = jnp.dot(z_ref[...], w1, preferred_element_type=jnp.float32)
    h = jnp.maximum(pre, 0.2 * pre)          # LeakyReLU(0.2); leaky(1) == 1

    # Layer 2: all client Linear(32, 2) heads + their biases in one matmul.
    # Lanes >= C*2 stay exactly 0 -> tanh(0) = 0, sliced off in the wrapper.
    o = jnp.dot(h, wc, preferred_element_type=jnp.float32)
    out_ref[...] = jnp.tanh(o)


def pack_generator_params(w1, b1, wc, bc):
    """One-time packing of all Generator parameters into a (256, 128) slab.

    w1: (100, 32)  first linear weight (stored as x @ W layout)
    b1: (32,)      first linear bias
    wc: (C, 32, 2) client head weights
    bc: (C, 2)     client head biases
    """
    K, H = w1.shape
    C, _, O = wc.shape
    co = C * O
    assert K < Z_PAD and H + 1 <= LANE and co <= LANE and H + 1 <= 128

    params = jnp.zeros((2 * 128, LANE), jnp.float32)
    # Layer-1 block.
    params = params.at[:K, :H].set(w1.astype(jnp.float32))
    params = params.at[K, :H].set(b1.astype(jnp.float32))
    params = params.at[K, H].set(1.0)                      # hidden ones-lane
    # Fused client-head block: wc_flat[k, c*O + j] = wc[c, k, j].
    wc_flat = wc.astype(jnp.float32).transpose(1, 0, 2).reshape(H, co)
    params = params.at[128:128 + H, :co].set(wc_flat)
    params = params.at[128 + H, :co].set(bc.astype(jnp.float32).reshape(co))
    return params


@partial(jax.jit, static_argnames=("num_client", "out_dim"))
def generator_forward(z, params, *, num_client, out_dim=2):
    """z: (B, 100); params: (256, 128) from pack_generator_params.

    Returns (num_client * B, out_dim), matching torch.cat(img, dim=0).
    """
    B, K = z.shape
    co = num_client * out_dim

    # Pad latent to 128 lanes with ONES: padded columns multiply the bias row
    # (and zeros) in the packed weights, folding b1 into the first matmul.
    z_aug = jnp.pad(z.astype(jnp.float32), ((0, 0), (0, Z_PAD - K)),
                    constant_values=1.0)

    # Batch tiling: single step for small B, double-buffered tiles otherwise.
    TB = B if B <= 512 else 512
    grid = (pl.cdiv(B, TB),)

    out_pad = pl.pallas_call(
        _generator_kernel,
        out_shape=jax.ShapeDtypeStruct((B, LANE), jnp.float32),
        grid=grid,
        in_specs=[pl.BlockSpec((TB, Z_PAD), lambda i: (i, 0)),
                  pl.BlockSpec((2 * 128, LANE), lambda i: (0, 0))],
        out_specs=pl.BlockSpec((TB, LANE), lambda i: (i, 0)),
        compiler_params=pltpu.CompilerParams(
            dimension_semantics=("parallel",)),
        cost_estimate=pl.CostEstimate(
            flops=2 * 2 * B * Z_PAD * LANE,
            transcendentals=B * LANE,
            bytes_accessed=(2 * B * LANE + 2 * 128 * LANE) * 4),
    )(z_aug, params)

    # Re-layout (B, C*O) -> (C*B, O) to match torch.cat(img, dim=0).
    out = out_pad[:, :co].reshape(B, num_client, out_dim)
    return jnp.swapaxes(out, 0, 1).reshape(num_client * B, out_dim)


def _reference_forward(z, w1, b1, wc, bc):
    """Pure-JAX reference mirroring the PyTorch module."""
    pre = z @ w1 + b1
    h = jnp.where(pre > 0, pre, 0.2 * pre)
    outs = [jnp.tanh(h @ wc[c] + bc[c]) for c in range(wc.shape[0])]
    return jnp.concatenate(outs, axis=0)


if __name__ == "__main__":
    B = 8            # batch
    Z_DIM = 100      # latent dim (fixed by the module: Linear(100, 32))
    H_DIM = 32
    OUT_DIM = 2
    NUM_CLIENT = 3

    key = jax.random.PRNGKey(0)
    k_z, k_w1, k_b1, k_wc, k_bc = jax.random.split(key, 5)

    z = jax.random.normal(k_z, (B, Z_DIM), dtype=jnp.float32)
    # Deterministic synthetic parameters (shapes match nn.Linear weights,
    # stored transposed so the kernel does x @ W).
    w1 = 0.1 * jax.random.normal(k_w1, (Z_DIM, H_DIM), dtype=jnp.float32)
    b1 = 0.1 * jax.random.normal(k_b1, (H_DIM,), dtype=jnp.float32)
    wc = 0.1 * jax.random.normal(k_wc, (NUM_CLIENT, H_DIM, OUT_DIM),
                                 dtype=jnp.float32)
    bc = 0.1 * jax.random.normal(k_bc, (NUM_CLIENT, OUT_DIM),
                                 dtype=jnp.float32)

    # One-time parameter packing (outside the per-step path).
    params = jax.block_until_ready(pack_generator_params(w1, b1, wc, bc))

    out = generator_forward(z, params, num_client=NUM_CLIENT, out_dim=OUT_DIM)
    out = jax.block_until_ready(out)

    ref = _reference_forward(z, w1, b1, wc, bc)
    assert out.shape == (NUM_CLIENT * B, OUT_DIM), out.shape
    assert jnp.allclose(out, ref, atol=1e-5, rtol=1e-5), "mismatch vs reference"

    print("KERNEL_OK")
</pallas_src>

<mosaic_0001>
module attributes {stable_mosaic.version = 11 : i64} {
  func.func @_generator_kernel(%arg0: i32, %arg1: memref<8x128xf32, #tpu.memory_space<vmem>>, %arg2: memref<256x128xf32, #tpu.memory_space<vmem>>, %arg3: memref<8x128xf32, #tpu.memory_space<vmem>>) attributes {dimension_semantics = [#tpu.dimension_semantics<parallel>], iteration_bounds = array<i64: 1>, scalar_prefetch = 0 : i64, scratch_operands = 0 : i64, tpu.core_type = #tpu.core_type<tc>, window_params = [{transform_indices = @transform_0, window_bounds = array<i64: 8, 128>}, {pipeline_mode = #tpu.pipeline_mode<synchronous>, transform_indices = @transform_1, window_bounds = array<i64: 256, 128>}, {transform_indices = @transform_2, window_bounds = array<i64: 8, 128>}]} {
    %c0 = arith.constant 0 : index
    %c0_0 = arith.constant 0 : index
    %0 = vector.load %arg2[%c0, %c0_0] : memref<256x128xf32, #tpu.memory_space<vmem>>, vector<128x128xf32>
    %c128 = arith.constant 128 : index
    %c0_1 = arith.constant 0 : index
    %1 = vector.load %arg2[%c128, %c0_1] : memref<256x128xf32, #tpu.memory_space<vmem>>, vector<128x128xf32>
    %c0_2 = arith.constant 0 : index
    %c0_3 = arith.constant 0 : index
    %2 = vector.load %arg1[%c0_2, %c0_3] : memref<8x128xf32, #tpu.memory_space<vmem>>, vector<8x128xf32>
    %cst = arith.constant dense<0.000000e+00> : vector<8x128xf32>
    %3 = tpu.matmul %2, %0, %cst {dimension_numbers = #tpu.dot_dimension_numbers<[1], [0], [0], [1], [0, 0, 1, 1], [], []>} : vector<8x128xf32>, vector<128x128xf32>, vector<8x128xf32> -> vector<8x128xf32>
    %cst_4 = arith.constant 2.000000e-01 : f32
    %4 = vector.broadcast %cst_4 : f32 to vector<8x128xf32>
    %5 = arith.mulf %4, %3 : vector<8x128xf32>
    %6 = arith.maximumf %3, %5 : vector<8x128xf32>
    %cst_5 = arith.constant dense<0.000000e+00> : vector<8x128xf32>
    %7 = tpu.matmul %6, %1, %cst_5 {dimension_numbers = #tpu.dot_dimension_numbers<[1], [0], [0], [1], [0, 0, 1, 1], [], []>} : vector<8x128xf32>, vector<128x128xf32>, vector<8x128xf32> -> vector<8x128xf32>
    %8 = math.tanh %7 : vector<8x128xf32>
    %c0_6 = arith.constant 0 : index
    %c0_7 = arith.constant 0 : index
    %9 = vector.load %arg3[%c0_6, %c0_7] : memref<8x128xf32, #tpu.memory_space<vmem>>, vector<8x128xf32>
    tpu.vector_store %arg3[%c0_6, %c0_7], %8 {strides = array<i32>} : memref<8x128xf32, #tpu.memory_space<vmem>>, vector<8x128xf32>,
    return
  }
  func.func @transform_0(%arg0: i32) -> (i32, i32) {
    %c0_i32 = arith.constant 0 : i32
    %c0_i32_0 = arith.constant 0 : i32
    return %arg0, %c0_i32 : i32, i32
  }
  func.func @transform_1(%arg0: i32) -> (i32, i32) {
    %c0_i32 = arith.constant 0 : i32
    %c0_i32_0 = arith.constant 0 : i32
    %c0_i32_1 = arith.constant 0 : i32
    return %c0_i32, %c0_i32_0 : i32, i32
  }
  func.func @transform_2(%arg0: i32) -> (i32, i32) {
    %c0_i32 = arith.constant 0 : i32
    %c0_i32_0 = arith.constant 0 : i32
    return %arg0, %c0_i32 : i32, i32
  }
}

</mosaic_0001>

<llo_original>
// kernel: generator_forward.1
$region0: #{generator_forward.1}
  #allocation0 [shape = 'u32[]', space=smem, size = 0x4, offset = 0x4, fixed_abs, tag = 'smem constant byte address 0x4 - core index']
  #allocation1 [shape = 'u32[144,128]{1,0:T(1,128)}', space=vmem, size = 0x12000, scoped, tag = 'internal scratch']
  %s0 = inlined_call_operand.vmem [shape: f32[8,128], index: 0, kind: input, shape index: {}]
  %s1 = inlined_call_operand.hbm [shape: f32[256,128], index: 1, kind: input, shape index: {}]
  %s2 = inlined_call_operand.vmem [shape: f32[8,128], index: 2, kind: output, shape index: {}]
  %s3 = sld [smem:[#allocation0]]
  $region22: #{generator_forward.1} parent=0
    _
  %s5 = ssub.s32 1, %s3
  %s6 = scalar_select 0, %s5, %s3
  $region1: #{generator_forward.1} parent=0
    #allocation2 [shape = 'u8[131072]{0}', space=vmem, size = 0x20000, scoped, tag = 'input window, operand 1, single buffered']
    #allocation3 [shape = 's32[1]{0}', space=sflag, size = 0x4, scoped, tag = 'scoped memory for generator_forward.1']
    %7 = vsyncpa [#allocation3], 0
    // Predicated region
    $region2: #{generator_forward.1} parent=1 // pred_check
      _
    $region3: #{generator_forward.1} parent=1 // pred_check_branch
      %9 = sbr.rel (0) target = $region5
    $region4: #{generator_forward.1} parent=1 // pred_region
      _
    $region5: #{generator_forward.1} parent=1 // pred_fallthru
      _
    // Predicated region
    $region6: #{generator_forward.1} parent=1 // pred_check
      _
    $region7: #{generator_forward.1} parent=1 // pred_check_branch
      %11 = sbr.rel (0) target = $region9
    $region8: #{generator_forward.1} parent=1 // pred_region
      %s13 = ssub.s32 4096, 4096
      %14 = vsyncadd [#allocation3], %s13
      %s15 = sshll.u32 [#allocation2], 4
      %s16 = int_to_ptr.vmem [resolvable:$true] %s15
      %21 = dma.hbm_to_vmem [thread:$0]  %s1, 4096, %s16, [#allocation3], 128, 128, 8
    $region9: #{generator_forward.1} parent=1 // pred_fallthru
      _
    // Predicated region
    $region10: #{generator_forward.1} parent=1 // pred_check
      _
    $region11: #{generator_forward.1} parent=1 // pred_check_branch
      %23 = sbr.rel (0) target = $region13
    $region12: #{generator_forward.1} parent=1 // pred_region
      %24 = dma.done [#allocation3], 4096
    $region13: #{generator_forward.1} parent=1 // pred_fallthru
      _
    %v25 = vld [vmem:[#allocation2] sm:$0xff]
    %v26 = vld [vmem:[#allocation2 + $0x8] sm:$0xff]
    %v27 = vld [vmem:[#allocation2 + $0x10] sm:$0xff]
    %v28 = vld [vmem:[#allocation2 + $0x18] sm:$0xff]
    %v29 = vld [vmem:[#allocation2 + $0x20] sm:$0xff]
    %v30 = vld [vmem:[#allocation2 + $0x28] sm:$0xff]
    %v31 = vld [vmem:[#allocation2 + $0x30] sm:$0xff]
    %v32 = vld [vmem:[#allocation2 + $0x38] sm:$0xff]
    %v33 = vld [vmem:[#allocation2 + $0x40] sm:$0xff]
    %v34 = vld [vmem:[#allocation2 + $0x48] sm:$0xff]
    %v35 = vld [vmem:[#allocation2 + $0x50] sm:$0xff]
    %v36 = vld [vmem:[#allocation2 + $0x58] sm:$0xff]
    %v37 = vld [vmem:[#allocation2 + $0x60] sm:$0xff]
    %v38 = vld [vmem:[#allocation2 + $0x68] sm:$0xff]
    %v39 = vld [vmem:[#allocation2 + $0x70] sm:$0xff]
    %v40 = vld [vmem:[#allocation2 + $0x78] sm:$0xff]
    %v41 = vld [vmem:[#allocation2 + $0x80] sm:$0xff]
    %v42 = vld [vmem:[#allocation2 + $0x88] sm:$0xff]
    %v43 = vld [vmem:[#allocation2 + $0x90] sm:$0xff]
    %v44 = vld [vmem:[#allocation2 + $0x98] sm:$0xff]
    %v45 = vld [vmem:[#allocation2 + $0xa0] sm:$0xff]
    %v46 = vld [vmem:[#allocation2 + $0xa8] sm:$0xff]
    %v47 = vld [vmem:[#allocation2 + $0xb0] sm:$0xff]
    %v48 = vld [vmem:[#allocation2 + $0xb8] sm:$0xff]
    %v49 = vld [vmem:[#allocation2 + $0xc0] sm:$0xff]
    %v50 = vld [vmem:[#allocation2 + $0xc8] sm:$0xff]
    %v51 = vld [vmem:[#allocation2 + $0xd0] sm:$0xff]
    %v52 = vld [vmem:[#allocation2 + $0xd8] sm:$0xff]
    %v53 = vld [vmem:[#allocation2 + $0xe0] sm:$0xff]
    %v54 = vld [vmem:[#allocation2 + $0xe8] sm:$0xff]
    %v55 = vld [vmem:[#allocation2 + $0xf0] sm:$0xff]
    %v56 = vld [vmem:[#allocation2 + $0xf8] sm:$0xff]
    %v57 = vld [vmem:[%s0] sm:$0xff]
    %58 = vmatprep.subr.mxu0 0.0
    %59 = vmatpush1.msra.mxu0 %v25
    %60 = vmatprep.subr.mxu0 0.0
    %61 = vmatpush1.msra.mxu0 %v26
    %62 = vmatprep.subr.mxu0 0.0
    %63 = vmatpush1.msra.mxu0 %v27
    %64 = vmatprep.subr.mxu0 0.0
    %65 = vmatpush1.msra.mxu0 %v28
    %66 = vmatprep.subr.mxu0 0.0
    %67 = vmatpush1.msra.mxu0 %v29
    %68 = vmatprep.subr.mxu0 0.0
    %69 = vmatpush1.msra.mxu0 %v30
    %70 = vmatprep.subr.mxu0 0.0
    %71 = vmatpush1.msra.mxu0 %v31
    %72 = vmatprep.subr.mxu0 0.0
    %73 = vmatpush1.msra.mxu0 %v32
    %74 = vmatprep.subr.mxu0 0.0
    %75 = vmatpush1.msra.mxu0 %v33
    %76 = vmatprep.subr.mxu0 0.0
    %77 = vmatpush1.msra.mxu0 %v34
    %78 = vmatprep.subr.mxu0 0.0
    %79 = vmatpush1.msra.mxu0 %v35
    %80 = vmatprep.subr.mxu0 0.0
    %81 = vmatpush1.msra.mxu0 %v36
    %82 = vmatprep.subr.mxu0 0.0
    %83 = vmatpush1.msra.mxu0 %v37
    %84 = vmatprep.subr.mxu0 0.0
    %85 = vmatpush1.msra.mxu0 %v38
    %86 = vmatprep.subr.mxu0 0.0
    %87 = vmatpush1.msra.mxu0 %v39
    %88 = vmatprep.subr.mxu0 0.0
    %89 = vmatpush1.msra.mxu0 %v40
    %90 = vmatprep.subr.mxu0 0.0
    %91 = vmatpush1.msra.mxu0 0.0
    %92 = vmatprep.subr.mxu0 0.0
    %93 = vmatpush1.msra.mxu0 0.0
    %94 = vmatprep.subr.mxu0 0.0
    %95 = vmatpush1.msra.mxu0 0.0
    %96 = vmatprep.subr.mxu0 0.0
    %97 = vmatpush1.msra.mxu0 0.0
    %98 = vmatprep.subr.mxu0 0.0
    %99 = vmatpush1.msra.mxu0 0.0
    %100 = vmatprep.subr.mxu0 0.0
    %101 = vmatpush1.msra.mxu0 0.0
    %102 = vmatprep.subr.mxu0 0.0
    %103 = vmatpush1.msra.mxu0 0.0
    %104 = vmatprep.subr.mxu0 0.0
    %105 = vmatpush1.msra.mxu0 0.0
    %106 = vmatprep.subr.mxu0 0.0
    %107 = vmatpush1.msra.mxu0 0.0
    %108 = vmatprep.subr.mxu0 0.0
    %109 = vmatpush1.msra.mxu0 0.0
    %110 = vmatprep.subr.mxu0 0.0
    %111 = vmatpush1.msra.mxu0 0.0
    %112 = vmatprep.subr.mxu0 0.0
    %113 = vmatpush1.msra.mxu0 0.0
    %114 = vmatprep.subr.mxu0 0.0
    %115 = vmatpush1.msra.mxu0 0.0
    %116 = vmatprep.subr.mxu0 0.0
    %117 = vmatpush1.msra.mxu0 0.0
    %118 = vmatprep.subr.mxu0 0.0
    %119 = vmatpush1.msra.mxu0 0.0
    %120 = vmatprep.subr.mxu0 0.0
    %121 = vmatpush1.msra.mxu0 0.0
    %122 = vmatprep.mubr.f32.mxu0 0.0
    %123 = vmatmul.mubr.f32.gmra.mrb[0].mxu0 %v57
    %v124 = vpop.f32.mrb[0].mxu0
    %v125 = vadd.f32 0.0, %v124
    %v126 = vpop.f32.mrb[0].mxu0
    %127 = vdwg.mxu0
    %v128 = vmul.f32 %v125, 0.2
    %v129 = vmax.f32 %v125, %v128
    %130 = vmatprep.subr.mxu0 0.0
    %131 = vmatpush1.msra.mxu0 %v41
    %132 = vmatprep.subr.mxu0 0.0
    %133 = vmatpush1.msra.mxu0 %v42
    %134 = vmatprep.subr.mxu0 0.0
    %135 = vmatpush1.msra.mxu0 %v43
    %136 = vmatprep.subr.mxu0 0.0
    %137 = vmatpush1.msra.mxu0 %v44
    %138 = vmatprep.subr.mxu0 0.0
    %139 = vmatpush1.msra.mxu0 %v45
    %140 = vmatprep.subr.mxu0 0.0
    %141 = vmatpush1.msra.mxu0 %v46
    %142 = vmatprep.subr.mxu0 0.0
    %143 = vmatpush1.msra.mxu0 %v47
    %144 = vmatprep.subr.mxu0 0.0
    %145 = vmatpush1.msra.mxu0 %v48
    %146 = vmatprep.subr.mxu0 0.0
    %147 = vmatpush1.msra.mxu0 %v49
    %148 = vmatprep.subr.mxu0 0.0
    %149 = vmatpush1.msra.mxu0 %v50
    %150 = vmatprep.subr.mxu0 0.0
    %151 = vmatpush1.msra.mxu0 %v51
    %152 = vmatprep.subr.mxu0 0.0
    %153 = vmatpush1.msra.mxu0 %v52
    %154 = vmatprep.subr.mxu0 0.0
    %155 = vmatpush1.msra.mxu0 %v53
    %156 = vmatprep.subr.mxu0 0.0
    %157 = vmatpush1.msra.mxu0 %v54
    %158 = vmatprep.subr.mxu0 0.0
    %159 = vmatpush1.msra.mxu0 %v55
    %160 = vmatprep.subr.mxu0 0.0
    %161 = vmatpush1.msra.mxu0 %v56
    %162 = vmatprep.subr.mxu0 0.0
    %163 = vmatpush1.msra.mxu0 0.0
    %164 = vmatprep.subr.mxu0 0.0
    %165 = vmatpush1.msra.mxu0 0.0
    %166 = vmatprep.subr.mxu0 0.0
    %167 = vmatpush1.msra.mxu0 0.0
    %168 = vmatprep.subr.mxu0 0.0
    %169 = vmatpush1.msra.mxu0 0.0
    %170 = vmatprep.subr.mxu0 0.0
    %171 = vmatpush1.msra.mxu0 0.0
    %172 = vmatprep.subr.mxu0 0.0
    %173 = vmatpush1.msra.mxu0 0.0
    %174 = vmatprep.subr.mxu0 0.0
    %175 = vmatpush1.msra.mxu0 0.0
    %176 = vmatprep.subr.mxu0 0.0
    %177 = vmatpush1.msra.mxu0 0.0
    %178 = vmatprep.subr.mxu0 0.0
    %179 = vmatpush1.msra.mxu0 0.0
    %180 = vmatprep.subr.mxu0 0.0
    %181 = vmatpush1.msra.mxu0 0.0
    %182 = vmatprep.subr.mxu0 0.0
    %183 = vmatpush1.msra.mxu0 0.0
    %184 = vmatprep.subr.mxu0 0.0
    %185 = vmatpush1.msra.mxu0 0.0
    %186 = vmatprep.subr.mxu0 0.0
    %187 = vmatpush1.msra.mxu0 0.0
    %188 = vmatprep.subr.mxu0 0.0
    %189 = vmatpush1.msra.mxu0 0.0
    %190 = vmatprep.subr.mxu0 0.0
    %191 = vmatpush1.msra.mxu0 0.0
    %192 = vmatprep.subr.mxu0 0.0
    %193 = vmatpush1.msra.mxu0 0.0
    %194 = vmatprep.mubr.f32.mxu0 0.0
    %195 = vmatmul.mubr.f32.gmra.mrb[0].mxu0 %v129
    %v196 = vpop.f32.mrb[0].mxu0
    %v197 = vadd.f32 0.0, %v196
    %v198 = vpop.f32.mrb[0].mxu0
    %199 = vdwg.mxu0
    %v200 = vtanh.pop %v197
    %201 = vst [vmem:[%s2] sm:$0xff] %v200
    // Predicated region
    $region14: #{generator_forward.1} parent=1 // pred_check
      _
    $region15: #{generator_forward.1} parent=1 // pred_check_branch
      %203 = sbr.rel (0) target = $region17
    $region16: #{generator_forward.1} parent=1 // pred_region
      _
    $region17: #{generator_forward.1} parent=1 // pred_fallthru
      _
    // Predicated region
    $region18: #{generator_forward.1} parent=1 // pred_check
      _
    $region19: #{generator_forward.1} parent=1 // pred_check_branch
      %205 = sbr.rel (0) target = $region21
    $region20: #{generator_forward.1} parent=1 // pred_region
      _
    $region21: #{generator_forward.1} parent=1 // pred_fallthru
      _
    %206 = vsyncpa [#allocation3], 1

</llo_original>
